<compile_context>
chip_gen: v6e
topology: v6e:2x2x1
jax: 0.10.0
libtpu: 0.0.40
codegen_flags: <defaults>
</compile_context>

<pallas_src>
import functools

import jax
import jax.numpy as jnp
from jax.experimental import pallas as pl
from jax.experimental.pallas import tpu as pltpu


# ----------------------------- kernel body -----------------------------------

def cbam_kernel(x_ref, w1_ref, b1_ref, w2_ref, b2_ref, k_ref, cb_ref, o_ref,
                *, inv_hw, compute_dtype):
    """Processes one (Bblk, C, HWp) lane-dense batch block."""
    x = x_ref[...].astype(compute_dtype)                       # (B, C, HWp)

    # ---------------- ChannelGate (pool_types=['avg']) ----------------
    # Global average pool: cross-lane reduce.  Divide by the *true* H*W (the
    # lane axis may be zero-padded to a multiple of 128; zeros don't change
    # the sum).
    avg = (jnp.sum(x, axis=-1) * inv_hw).astype(jnp.float32)   # (B, C)
    # Batched shared MLP: (B,C)@(C,hid) -> ReLU -> (B,hid)@(hid,C).
    h = jnp.dot(avg, w1_ref[...], preferred_element_type=jnp.float32) + b1_ref[...]
    h = jnp.maximum(h, 0.0)
    att = jnp.dot(h, w2_ref[...], preferred_element_type=jnp.float32) + b2_ref[...]
    scale_c = jax.nn.sigmoid(att).astype(compute_dtype)        # (B, C)
    x1 = x * scale_c[:, :, None]                               # (B, C, HWp)

    # ---------------- SpatialGate ----------------
    comp = jnp.mean(x1, axis=1).astype(jnp.float32)            # (B, HWp) channel mean
    # 7x7 zero-padded conv + folded BN as one lane-aligned MXU matmul.
    conv = jnp.dot(comp, k_ref[...],
                   preferred_element_type=jnp.float32) + cb_ref[0]
    scale_s = jax.nn.sigmoid(conv).astype(compute_dtype)       # (B, HWp)

    o_ref[...] = (x1 * scale_s[:, None, :]).astype(o_ref.dtype)


# ----------------------------- wrapper helpers --------------------------------

def _conv7x7_as_matrix(conv_w, H, W, HWp):
    """Dense (HWp, HWp) operator K s.t. out_flat = comp_flat @ K equals a
    'same' 7x7 zero-padded cross-correlation (PyTorch Conv2d) on the (H, W)
    grid; rows/cols beyond H*W are zero (spatial lane padding).

    # TODO(synk): O((H*W)^2) memory; switch to shifted-add / separable form
    # for large feature maps (see header note).
    """
    hs = jnp.arange(H)
    ws = jnp.arange(W)
    # index layout: [h_src, w_src, h_dst, w_dst]
    dh = hs[:, None, None, None] - hs[None, None, :, None] + 3
    dw = ws[None, :, None, None] - ws[None, None, None, :] + 3
    valid = (dh >= 0) & (dh < 7) & (dw >= 0) & (dw < 7)
    kvals = conv_w[jnp.clip(dh, 0, 6), jnp.clip(dw, 0, 6)]
    k = jnp.where(valid, kvals, 0.0).reshape(H * W, H * W).astype(jnp.float32)
    hw = H * W
    if HWp != hw:
        k = jnp.pad(k, ((0, HWp - hw), (0, HWp - hw)))
    return k


def _tpu_vmem_capacity_bytes(default=64 * 1024 * 1024):
    """Generation-aware VMEM capacity (128 MiB v5e/v6e, 64 MiB v7x).
    Conservative 64 MiB fallback if the query is unavailable."""
    try:
        info = pltpu.get_tpu_info()
        cap = getattr(info, "vmem_capacity_bytes", None)
        if cap:
            return int(cap)
    except Exception:
        pass
    return default


def _bf16_elementwise_ok():
    """bf16 VALU exists on v6e/v7x; on v5e (and older) bf16 elementwise would
    insert per-op converts, so keep f32 compute there."""
    try:
        kind = jax.devices()[0].device_kind.lower()
    except Exception:
        return False
    return ("v6" in kind) or ("v7" in kind)


def _plan_blocks(N, C, HWp, hidden, io_bytes, compute_bytes):
    """Pick the batch block Bblk and an explicit scoped-VMEM limit.

    Per-step footprint: double-buffered in/out slabs plus ~3 compute-dtype
    temporaries of the slab, minus the (double-buffered) grid-invariant
    operands.  Bblk is capped so the grid has >= 2 steps (v7x megacore)."""
    cap = _tpu_vmem_capacity_bytes()
    block_budget = int(cap * 0.55)

    # Grid-invariant operands (kept resident, but pipeline double-buffers them).
    const_bytes = 2 * 4 * (HWp * HWp + C * hidden + hidden + hidden * C + C)

    per_img = C * HWp * (2 * io_bytes + 2 * io_bytes + 3 * compute_bytes)
    avail = max(block_budget - const_bytes, per_img)
    bmax = max(1, min(N, avail // per_img))
    if N >= 2:
        bmax = max(1, min(bmax, N // 2))    # >= 2 grid steps for 2-TC sharding
    bblk = bmax
    while N % bblk:
        bblk -= 1

    planned = const_bytes + bblk * per_img
    vmem_limit = int(min(int(cap * 0.75),
                         max(32 * 1024 * 1024, planned + planned // 2)))
    return bblk, vmem_limit


# ----------------------------- forward wrapper --------------------------------

@jax.jit
def cbam_forward(x, w1_t, b1, w2_t, b2, conv_w, conv_b):
    N, C, H, W = x.shape
    HW = H * W
    HWp = max(128, ((HW + 127) // 128) * 128)   # lane-dense (multiple of 128)
    hidden = w1_t.shape[1]

    compute_dtype = (jnp.bfloat16
                     if (x.dtype == jnp.bfloat16 and _bf16_elementwise_ok())
                     else jnp.float32)
    io_bytes = x.dtype.itemsize
    comp_bytes = 2 if compute_dtype == jnp.bfloat16 else 4
    bblk, vmem_limit = _plan_blocks(N, C, HWp, hidden, io_bytes, comp_bytes)

    x_flat = x.reshape(N, C, HW)                # free for contiguous NCHW
    if HWp != HW:
        x_flat = jnp.pad(x_flat, ((0, 0), (0, 0), (0, HWp - HW)))

    conv_mat = _conv7x7_as_matrix(conv_w, H, W, HWp)   # (HWp, HWp), VMEM-resident

    kernel = functools.partial(cbam_kernel, inv_hw=1.0 / HW,
                               compute_dtype=compute_dtype)

    out_flat = pl.pallas_call(
        kernel,
        out_shape=jax.ShapeDtypeStruct((N, C, HWp), x.dtype),
        grid_spec=pltpu.PrefetchScalarGridSpec(
            num_scalar_prefetch=0,
            grid=(N // bblk,),
            in_specs=[
                pl.BlockSpec((bblk, C, HWp), lambda i: (i, 0, 0)),   # x slab
                # Grid-invariant operands: constant index maps keep them
                # resident (DMA'd once per core).
                pl.BlockSpec((C, hidden), lambda i: (0, 0)),         # W1^T
                pl.BlockSpec((1, hidden), lambda i: (0, 0)),         # b1
                pl.BlockSpec((hidden, C), lambda i: (0, 0)),         # W2^T
                pl.BlockSpec((1, C), lambda i: (0, 0)),              # b2
                pl.BlockSpec((HWp, HWp), lambda i: (0, 0)),          # conv operator K
                pl.BlockSpec(memory_space=pltpu.MemorySpace.SMEM),   # folded conv/BN bias
            ],
            out_specs=pl.BlockSpec((bblk, C, HWp), lambda i: (i, 0, 0)),
        ),
        compiler_params=pltpu.CompilerParams(
            dimension_semantics=("parallel",),       # batch blocks independent
            vmem_limit_bytes=vmem_limit),
    )(x_flat, w1_t, b1, w2_t, b2, conv_mat, conv_b)

    if HWp != HW:
        out_flat = out_flat[:, :, :HW]
    return out_flat.reshape(N, C, H, W)


# ----------------------------- pure-JAX reference -----------------------------

def cbam_reference(x, w1_t, b1, w2_t, b2, conv_w, conv_b):
    """Pure-JAX reference of the same (BN-folded) computation."""
    avg = jnp.mean(x, axis=(2, 3))                              # (N, C)
    h = jax.nn.relu(avg @ w1_t + b1)                            # (N, hid)
    att = h @ w2_t + b2                                         # (N, C)
    scale_c = jax.nn.sigmoid(att)[:, :, None, None]
    x1 = x * scale_c
    comp = jnp.mean(x1, axis=1, keepdims=True)                  # (N, 1, H, W)
    conv = jax.lax.conv_general_dilated(
        comp, conv_w.reshape(1, 1, 7, 7), window_strides=(1, 1),
        padding=((3, 3), (3, 3)),
        dimension_numbers=("NCHW", "OIHW", "NCHW")) + conv_b[0]
    scale_s = jax.nn.sigmoid(conv)
    return x1 * scale_s


# ----------------------------- self-test ---------------------------------------

def _make_params(key, C, reduction=16):
    hidden = max(1, C // reduction)
    k1, kb1, k2, kb2, kc = jax.random.split(key, 5)
    # PyTorch Linear: y = x @ W^T + b; we pass W^T.
    w1_t = jax.random.normal(k1, (C, hidden), dtype=jnp.float32) * 0.1
    b1 = jax.random.normal(kb1, (1, hidden), dtype=jnp.float32) * 0.1
    w2_t = jax.random.normal(k2, (hidden, C), dtype=jnp.float32) * 0.1
    b2 = jax.random.normal(kb2, (1, C), dtype=jnp.float32) * 0.1
    # SpatialGate BasicConv: 7x7 conv (bias=False) with eval-mode BatchNorm
    # folded in (gamma=1, beta=0, running_mean=0, running_var=1, eps=1e-5).
    conv_w_raw = jax.random.normal(kc, (7, 7), dtype=jnp.float32) * 0.05
    conv_w = conv_w_raw * (1.0 / jnp.sqrt(1.0 + 1e-5))
    conv_b = jnp.zeros((1,), dtype=jnp.float32)
    return w1_t, b1, w2_t, b2, conv_w, conv_b


if __name__ == "__main__":
    key = jax.random.PRNGKey(0)
    kx1, kx2, kx3, kp1, kp2 = jax.random.split(key, 5)
    C = 64  # gate_channels; reduction_ratio=16 -> hidden=4

    # 1) f32, lane-aligned spatial (16x16 -> HW=256).
    params = _make_params(kp1, C)
    x = jax.random.normal(kx1, (2, C, 16, 16), dtype=jnp.float32)
    out = jax.block_until_ready(cbam_forward(x, *params))
    ref = cbam_reference(x, *params)
    assert out.shape == x.shape
    assert jnp.allclose(out, ref, rtol=1e-3, atol=1e-3), "f32 aligned mismatch"

    # 2) f32, lane-unaligned spatial (14x14 -> HW=196, zero-padded to 256).
    params2 = _make_params(kp2, C)
    x2 = jax.random.normal(kx2, (2, C, 14, 14), dtype=jnp.float32)
    out2 = jax.block_until_ready(cbam_forward(x2, *params2))
    ref2 = cbam_reference(x2, *params2)
    assert out2.shape == x2.shape
    assert jnp.allclose(out2, ref2, rtol=1e-3, atol=1e-3), "f32 padded mismatch"

    # 3) bf16 input: bf16-resident elementwise path on v6e/v7x, f32 on v5e.
    x3 = jax.random.normal(kx3, (2, C, 16, 16), dtype=jnp.float32).astype(jnp.bfloat16)
    out3 = jax.block_until_ready(cbam_forward(x3, *params))
    ref3 = cbam_reference(x3.astype(jnp.float32), *params)
    assert out3.shape == x3.shape
    assert jnp.allclose(out3.astype(jnp.float32), ref3, rtol=1e-1, atol=1e-1), \
        "bf16 mismatch"

    print("KERNEL_OK")
</pallas_src>

<mosaic_0001>
module attributes {stable_mosaic.version = 11 : i64} {
  func.func @cbam_kernel(%arg0: i32, %arg1: memref<1x64x256xf32, #tpu.memory_space<vmem>>, %arg2: memref<64x4xf32, #tpu.memory_space<vmem>>, %arg3: memref<1x4xf32, #tpu.memory_space<vmem>>, %arg4: memref<4x64xf32, #tpu.memory_space<vmem>>, %arg5: memref<1x64xf32, #tpu.memory_space<vmem>>, %arg6: memref<256x256xf32, #tpu.memory_space<vmem>>, %arg7: memref<1xf32, #tpu.memory_space<smem>>, %arg8: memref<1x64x256xf32, #tpu.memory_space<vmem>>) attributes {dimension_semantics = [#tpu.dimension_semantics<parallel>], iteration_bounds = array<i64: 2>, scalar_prefetch = 0 : i64, scratch_operands = 0 : i64, tpu.core_type = #tpu.core_type<tc>, window_params = [{transform_indices = @transform_0, window_bounds = array<i64: 1, 64, 256>}, {pipeline_mode = #tpu.pipeline_mode<synchronous>, transform_indices = @transform_1, window_bounds = array<i64: 64, 4>}, {pipeline_mode = #tpu.pipeline_mode<synchronous>, transform_indices = @transform_2, window_bounds = array<i64: 1, 4>}, {pipeline_mode = #tpu.pipeline_mode<synchronous>, transform_indices = @transform_3, window_bounds = array<i64: 4, 64>}, {pipeline_mode = #tpu.pipeline_mode<synchronous>, transform_indices = @transform_4, window_bounds = array<i64: 1, 64>}, {pipeline_mode = #tpu.pipeline_mode<synchronous>, transform_indices = @transform_5, window_bounds = array<i64: 256, 256>}, {transform_indices = @transform_6, window_bounds = array<i64: 1>}, {transform_indices = @transform_7, window_bounds = array<i64: 1, 64, 256>}]} {
    %c0 = arith.constant 0 : index
    %c0_0 = arith.constant 0 : index
    %c0_1 = arith.constant 0 : index
    %0 = vector.load %arg1[%c0, %c0_0, %c0_1] : memref<1x64x256xf32, #tpu.memory_space<vmem>>, vector<1x64x256xf32>
    %cst = arith.constant dense<0.000000e+00> : vector<1x64xf32>
    %1 = vector.multi_reduction <add>, %0, %cst [2] : vector<1x64x256xf32> to vector<1x64xf32>
    %cst_2 = arith.constant 3.906250e-03 : f32
    %2 = vector.broadcast %cst_2 : f32 to vector<1x64xf32>
    %3 = arith.mulf %1, %2 : vector<1x64xf32>
    %c0_3 = arith.constant 0 : index
    %c0_4 = arith.constant 0 : index
    %4 = vector.load %arg2[%c0_3, %c0_4] : memref<64x4xf32, #tpu.memory_space<vmem>>, vector<64x4xf32>
    %cst_5 = arith.constant dense<0.000000e+00> : vector<1x4xf32>
    %5 = tpu.matmul %3, %4, %cst_5 {dimension_numbers = #tpu.dot_dimension_numbers<[1], [0], [0], [1], [0, 0, 1, 1], [], []>} : vector<1x64xf32>, vector<64x4xf32>, vector<1x4xf32> -> vector<1x4xf32>
    %c0_6 = arith.constant 0 : index
    %c0_7 = arith.constant 0 : index
    %6 = vector.load %arg3[%c0_6, %c0_7] : memref<1x4xf32, #tpu.memory_space<vmem>>, vector<1x4xf32>
    %7 = arith.addf %5, %6 : vector<1x4xf32>
    %cst_8 = arith.constant 0.000000e+00 : f32
    %8 = vector.broadcast %cst_8 : f32 to vector<1x4xf32>
    %9 = arith.maximumf %7, %8 : vector<1x4xf32>
    %c0_9 = arith.constant 0 : index
    %c0_10 = arith.constant 0 : index
    %10 = vector.load %arg4[%c0_9, %c0_10] : memref<4x64xf32, #tpu.memory_space<vmem>>, vector<4x64xf32>
    %cst_11 = arith.constant dense<0.000000e+00> : vector<1x64xf32>
    %11 = tpu.matmul %9, %10, %cst_11 {dimension_numbers = #tpu.dot_dimension_numbers<[1], [0], [0], [1], [0, 0, 1, 1], [], []>} : vector<1x4xf32>, vector<4x64xf32>, vector<1x64xf32> -> vector<1x64xf32>
    %c0_12 = arith.constant 0 : index
    %c0_13 = arith.constant 0 : index
    %12 = vector.load %arg5[%c0_12, %c0_13] : memref<1x64xf32, #tpu.memory_space<vmem>>, vector<1x64xf32>
    %13 = arith.addf %11, %12 : vector<1x64xf32>
    %14 = arith.negf %13 : vector<1x64xf32>
    %15 = math.exp %14 : vector<1x64xf32>
    %cst_14 = arith.constant 1.000000e+00 : f32
    %16 = vector.broadcast %cst_14 : f32 to vector<1x64xf32>
    %17 = arith.addf %16, %15 : vector<1x64xf32>
    %18 = arith.divf %16, %17 : vector<1x64xf32>
    %19 = vector.shape_cast %18 : vector<1x64xf32> to vector<1x64x1xf32>
    %20 = vector.broadcast %19 : vector<1x64x1xf32> to vector<1x64x256xf32>
    %21 = arith.mulf %0, %20 : vector<1x64x256xf32>
    %cst_15 = arith.constant dense<0.000000e+00> : vector<1x256xf32>
    %22 = vector.multi_reduction <add>, %21, %cst_15 [1] : vector<1x64x256xf32> to vector<1x256xf32>
    %cst_16 = arith.constant 6.400000e+01 : f32
    %23 = vector.broadcast %cst_16 : f32 to vector<1x256xf32>
    %24 = arith.divf %22, %23 : vector<1x256xf32>
    %c0_17 = arith.constant 0 : index
    %c0_18 = arith.constant 0 : index
    %25 = vector.load %arg6[%c0_17, %c0_18] : memref<256x256xf32, #tpu.memory_space<vmem>>, vector<256x256xf32>
    %cst_19 = arith.constant dense<0.000000e+00> : vector<1x256xf32>
    %26 = tpu.matmul %24, %25, %cst_19 {dimension_numbers = #tpu.dot_dimension_numbers<[1], [0], [0], [1], [0, 0, 1, 1], [], []>} : vector<1x256xf32>, vector<256x256xf32>, vector<1x256xf32> -> vector<1x256xf32>
    %c0_20 = arith.constant 0 : index
    %27 = memref.load %arg7[%c0_20] : memref<1xf32, #tpu.memory_space<smem>>
    %28 = vector.broadcast %27 : f32 to vector<1x256xf32>
    %29 = arith.addf %26, %28 : vector<1x256xf32>
    %30 = arith.negf %29 : vector<1x256xf32>
    %31 = math.exp %30 : vector<1x256xf32>
    %cst_21 = arith.constant 1.000000e+00 : f32
    %32 = vector.broadcast %cst_21 : f32 to vector<1x256xf32>
    %33 = arith.addf %32, %31 : vector<1x256xf32>
    %34 = arith.divf %32, %33 : vector<1x256xf32>
    %35 = vector.shape_cast %34 : vector<1x256xf32> to vector<1x1x256xf32>
    %36 = vector.broadcast %35 : vector<1x1x256xf32> to vector<1x64x256xf32>
    %37 = arith.mulf %21, %36 : vector<1x64x256xf32>
    %c0_22 = arith.constant 0 : index
    %c0_23 = arith.constant 0 : index
    %c0_24 = arith.constant 0 : index
    %38 = vector.load %arg8[%c0_22, %c0_23, %c0_24] : memref<1x64x256xf32, #tpu.memory_space<vmem>>, vector<1x64x256xf32>
    tpu.vector_store %arg8[%c0_22, %c0_23, %c0_24], %37 {strides = array<i32>} : memref<1x64x256xf32, #tpu.memory_space<vmem>>, vector<1x64x256xf32>,
    return
  }
  func.func @transform_0(%arg0: i32) -> (i32, i32, i32) {
    %c0_i32 = arith.constant 0 : i32
    %c0_i32_0 = arith.constant 0 : i32
    %c0_i32_1 = arith.constant 0 : i32
    return %arg0, %c0_i32, %c0_i32_0 : i32, i32, i32
  }
  func.func @transform_1(%arg0: i32) -> (i32, i32) {
    %c0_i32 = arith.constant 0 : i32
    %c0_i32_0 = arith.constant 0 : i32
    %c0_i32_1 = arith.constant 0 : i32
    return %c0_i32, %c0_i32_0 : i32, i32
  }
  func.func @transform_2(%arg0: i32) -> (i32, i32) {
    %c0_i32 = arith.constant 0 : i32
    %c0_i32_0 = arith.constant 0 : i32
    %c0_i32_1 = arith.constant 0 : i32
    return %c0_i32, %c0_i32_0 : i32, i32
  }
  func.func @transform_3(%arg0: i32) -> (i32, i32) {
    %c0_i32 = arith.constant 0 : i32
    %c0_i32_0 = arith.constant 0 : i32
    %c0_i32_1 = arith.constant 0 : i32
    return %c0_i32, %c0_i32_0 : i32, i32
  }
  func.func @transform_4(%arg0: i32) -> (i32, i32) {
    %c0_i32 = arith.constant 0 : i32
    %c0_i32_0 = arith.constant 0 : i32
    %c0_i32_1 = arith.constant 0 : i32
    return %c0_i32, %c0_i32_0 : i32, i32
  }
  func.func @transform_5(%arg0: i32) -> (i32, i32) {
    %c0_i32 = arith.constant 0 : i32
    %c0_i32_0 = arith.constant 0 : i32
    %c0_i32_1 = arith.constant 0 : i32
    return %c0_i32, %c0_i32_0 : i32, i32
  }
  func.func @transform_6(%arg0: i32) -> i32 {
    %c0_i32 = arith.constant 0 : i32
    %c0_i32_0 = arith.constant 0 : i32
    return %c0_i32 : i32
  }
  func.func @transform_7(%arg0: i32) -> (i32, i32, i32) {
    %c0_i32 = arith.constant 0 : i32
    %c0_i32_0 = arith.constant 0 : i32
    %c0_i32_1 = arith.constant 0 : i32
    return %arg0, %c0_i32, %c0_i32_0 : i32, i32, i32
  }
}

</mosaic_0001>

<llo_original>
// kernel: cbam_forward.1
$region0: #{cbam_forward.1}
  #allocation0 [shape = 'u32[]', space=smem, size = 0x4, offset = 0x4, fixed_abs, tag = 'smem constant byte address 0x4 - core index']
  #allocation1 [shape = 'u32[144,128]{1,0:T(1,128)}', space=vmem, size = 0x12000, scoped, tag = 'internal scratch']
  #allocation2 [shape = 'f32[1]{0:T(128)S(6)}', space=smem, size = 0x200, scoped, tag = 'scoped memory for cbam_forward.1']
  %s0 = inlined_call_operand.vmem [shape: f32[2,64,256], index: 0, kind: input, shape index: {}]
  %s1 = inlined_call_operand.vmem [shape: f32[64,4], index: 1, kind: input, shape index: {}]
  %s2 = inlined_call_operand.vmem [shape: f32[1,4], index: 2, kind: input, shape index: {}]
  %s3 = inlined_call_operand.vmem [shape: f32[4,64], index: 3, kind: input, shape index: {}]
  %s4 = inlined_call_operand.vmem [shape: f32[1,64], index: 4, kind: input, shape index: {}]
  %s5 = inlined_call_operand.vmem [shape: f32[256,256], index: 5, kind: input, shape index: {}]
  %s6 = inlined_call_operand.<no memory space> [shape: f32[1], index: 6, kind: input, shape index: {}]
  %s7 = inlined_call_operand.vmem [shape: f32[2,64,256], index: 7, kind: output, shape index: {}]
  %s8 = sld [smem:[#allocation0]]
  $region61: #{cbam_forward.1} parent=0
    _
  %s10 = ssub.s32 1, %s8
  %s11 = scalar_select 0, %s10, %s8
  %12 = sst [smem:[#allocation2]] %s6
  loop: start=0, step=1, limit=4
  $region2: #{cbam_forward.1} parent=0 // loop_pre_header
    _
  $region3: #{cbam_forward.1} parent=0 // loop_header
    %s14 = sphi 0, %s18
    %p15 = scmp.ge.s32.totalorder %s14, 4
    %s24 = sphi 0, %s26
    %s27 = sphi 0, %s24
    %s28 = sphi 0, %s27
    %s44 = sphi 0, %s28
    %s48 = sphi 0, %s48
    %s50 = sphi 0, %s48
    %s51 = sphi 0, %s50
    %s65 = sphi 0, %s51
    %s69 = sphi 0, %s69
    %s71 = sphi 0, %s69
    %s72 = sphi 0, %s71
    %s86 = sphi 0, %s72
    %s90 = sphi 0, %s90
    %s92 = sphi 0, %s90
    %s93 = sphi 0, %s92
    %s107 = sphi 0, %s93
    %s111 = sphi 0, %s111
    %s113 = sphi 0, %s111
    %s114 = sphi 0, %s113
    %s128 = sphi 0, %s114
    %s132 = sphi 0, %s132
    %s134 = sphi 0, %s132
    %s135 = sphi 0, %s134
    %s149 = sphi 0, %s135
    %s153 = sphi 0, %s153
    %s155 = sphi 0, %s153
    %s156 = sphi 0, %s155
    %s170 = sphi 0, %s156
    %s176 = sphi 0, %s178
    %s179 = sphi 0, %s176
    %s180 = sphi 0, %s179
    %s196 = sphi 0, %s180
  $region4: #{cbam_forward.1} parent=0 // loop_header_branch
    %17 = sbr.rel (%p15) target = $region8
  $region5: #{cbam_forward.1} parent=0 // loop_body
    %s19 = ssub.s32 %s14, 1
    %s20 = ssub.s32 %s14, 2
    %s21 = sadd.s32 %s14, 1
    %s22 = ssub.s32 %s14, %s21
    %p23 = scmp.eq.s32.totalorder %s22, 0
    %s25 = sadd.s32 %s24, 1
    %s26 = scalar_select %p23, %s24, %s25
    %p29 = pneg %p23
    %p30 = scmp.eq.s32.totalorder %s14, 1
    %p31 = por %p29, %p30
    %p32 = scmp.ne.s32.totalorder %s24, %s27
    %p33 = scmp.eq.s32.totalorder %s14, 0
    %p34 = por %p32, %p33
    %p35 = scmp.ne.s32.totalorder %s24, %s27
    %p36 = scmp.eq.s32.totalorder %s19, 1
    %p37 = por %p35, %p36
    %p38 = scmp.ne.s32.totalorder %s27, %s28
    %p39 = scmp.eq.s32.totalorder %s19, 0
    %p40 = por %p38, %p39
    %p41 = scmp.ne.s32.totalorder %s27, %s28
    %p42 = scmp.eq.s32.totalorder %s20, 1
    %p43 = por %p41, %p42
    %p45 = scmp.ne.s32.totalorder %s28, %s44
    %p46 = scmp.eq.s32.totalorder %s20, 0
    %p47 = por %p45, %p46
    %s49 = sadd.s32 %s48, 1
    %p52 = scmp.eq.s32.totalorder %s14, 1
    %p53 = scmp.ne.s32.totalorder %s48, %s50
    %p54 = scmp.eq.s32.totalorder %s14, 0
    %p55 = por %p53, %p54
    %p56 = scmp.ne.s32.totalorder %s48, %s50
    %p57 = scmp.eq.s32.totalorder %s19, 1
    %p58 = por %p56, %p57
    %p59 = scmp.ne.s32.totalorder %s50, %s51
    %p60 = scmp.eq.s32.totalorder %s19, 0
    %p61 = por %p59, %p60
    %p62 = scmp.ne.s32.totalorder %s50, %s51
    %p63 = scmp.eq.s32.totalorder %s20, 1
    %p64 = por %p62, %p63
    %p66 = scmp.ne.s32.totalorder %s51, %s65
    %p67 = scmp.eq.s32.totalorder %s20, 0
    %p68 = por %p66, %p67
    %s70 = sadd.s32 %s69, 1
    %p73 = scmp.eq.s32.totalorder %s14, 1
    %p74 = scmp.ne.s32.totalorder %s69, %s71
    %p75 = scmp.eq.s32.totalorder %s14, 0
    %p76 = por %p74, %p75
    %p77 = scmp.ne.s32.totalorder %s69, %s71
    %p78 = scmp.eq.s32.totalorder %s19, 1
    %p79 = por %p77, %p78
    %p80 = scmp.ne.s32.totalorder %s71, %s72
    %p81 = scmp.eq.s32.totalorder %s19, 0
    %p82 = por %p80, %p81
    %p83 = scmp.ne.s32.totalorder %s71, %s72
    %p84 = scmp.eq.s32.totalorder %s20, 1
    %p85 = por %p83, %p84
    %p87 = scmp.ne.s32.totalorder %s72, %s86
    %p88 = scmp.eq.s32.totalorder %s20, 0
    %p89 = por %p87, %p88
    %s91 = sadd.s32 %s90, 1
    %p94 = scmp.eq.s32.totalorder %s14, 1
    %p95 = scmp.ne.s32.totalorder %s90, %s92
    %p96 = scmp.eq.s32.totalorder %s14, 0
    %p97 = por %p95, %p96
    %p98 = scmp.ne.s32.totalorder %s90, %s92
    %p99 = scmp.eq.s32.totalorder %s19, 1
    %p100 = por %p98, %p99
    %p101 = scmp.ne.s32.totalorder %s92, %s93
    %p102 = scmp.eq.s32.totalorder %s19, 0
    %p103 = por %p101, %p102
    %p104 = scmp.ne.s32.totalorder %s92, %s93
    %p105 = scmp.eq.s32.totalorder %s20, 1
    %p106 = por %p104, %p105
    %p108 = scmp.ne.s32.totalorder %s93, %s107
    %p109 = scmp.eq.s32.totalorder %s20, 0
    %p110 = por %p108, %p109
    %s112 = sadd.s32 %s111, 1
    %p115 = scmp.eq.s32.totalorder %s14, 1
    %p116 = scmp.ne.s32.totalorder %s111, %s113
    %p117 = scmp.eq.s32.totalorder %s14, 0
    %p118 = por %p116, %p117
    %p119 = scmp.ne.s32.totalorder %s111, %s113
    %p120 = scmp.eq.s32.totalorder %s19, 1
    %p121 = por %p119, %p120
    %p122 = scmp.ne.s32.totalorder %s113, %s114
    %p123 = scmp.eq.s32.totalorder %s19, 0
    %p124 = por %p122, %p123
    %p125 = scmp.ne.s32.totalorder %s113, %s114
    %p126 = scmp.eq.s32.totalorder %s20, 1
    %p127 = por %p125, %p126
    %p129 = scmp.ne.s32.totalorder %s114, %s128
    %p130 = scmp.eq.s32.totalorder %s20, 0
    %p131 = por %p129, %p130
    %s133 = sadd.s32 %s132, 1
    %p136 = scmp.eq.s32.totalorder %s14, 1
    %p137 = scmp.ne.s32.totalorder %s132, %s134
    %p138 = scmp.eq.s32.totalorder %s14, 0
    %p139 = por %p137, %p138
    %p140 = scmp.ne.s32.totalorder %s132, %s134
    %p141 = scmp.eq.s32.totalorder %s19, 1
    %p142 = por %p140, %p141
    %p143 = scmp.ne.s32.totalorder %s134, %s135
    %p144 = scmp.eq.s32.totalorder %s19, 0
    %p145 = por %p143, %p144
    %p146 = scmp.ne.s32.totalorder %s134, %s135
    %p147 = scmp.eq.s32.totalorder %s20, 1
    %p148 = por %p146, %p147
    %p150 = scmp.ne.s32.totalorder %s135, %s149
    %p151 = scmp.eq.s32.totalorder %s20, 0
    %p152 = por %p150, %p151
    %s154 = sadd.s32 %s153, 1
    %p157 = scmp.eq.s32.totalorder %s14, 1
    %p158 = scmp.ne.s32.totalorder %s153, %s155
    %p159 = scmp.eq.s32.totalorder %s14, 0
    %p160 = por %p158, %p159
    %p161 = scmp.ne.s32.totalorder %s153, %s155
    %p162 = scmp.eq.s32.totalorder %s19, 1
    %p163 = por %p161, %p162
    %p164 = scmp.ne.s32.totalorder %s155, %s156
    %p165 = scmp.eq.s32.totalorder %s19, 0
    %p166 = por %p164, %p165
    %p167 = scmp.ne.s32.totalorder %s155, %s156
    %p168 = scmp.eq.s32.totalorder %s20, 1
    %p169 = por %p167, %p168
    %p171 = scmp.ne.s32.totalorder %s156, %s170
    %p172 = scmp.eq.s32.totalorder %s20, 0
    %p173 = por %p171, %p172
    %s174 = ssub.s32 %s14, %s21
    %p175 = scmp.eq.s32.totalorder %s174, 0
    %s177 = sadd.s32 %s176, 1
    %s178 = scalar_select %p175, %s176, %s177
    %p181 = pneg %p175
    %p182 = scmp.eq.s32.totalorder %s14, 1
    %p183 = por %p181, %p182
    %p184 = scmp.ne.s32.totalorder %s176, %s179
    %p185 = scmp.eq.s32.totalorder %s14, 0
    %p186 = por %p184, %p185
    %p187 = scmp.ne.s32.totalorder %s176, %s179
    %p188 = scmp.eq.s32.totalorder %s19, 1
    %p189 = por %p187, %p188
    %p190 = scmp.ne.s32.totalorder %s179, %s180
    %p191 = scmp.eq.s32.totalorder %s19, 0
    %p192 = por %p190, %p191
    %p193 = scmp.ne.s32.totalorder %s179, %s180
    %p194 = scmp.eq.s32.totalorder %s20, 1
    %p195 = por %p193, %p194
    %p197 = scmp.ne.s32.totalorder %s180, %s196
    %p198 = scmp.eq.s32.totalorder %s20, 0
    %p199 = por %p197, %p198
    %p200 = scmp.le.s32.totalorder 1, %s14
    %p201 = scmp.lt.s32.totalorder %s14, 3
    %p202 = pnand %p200, %p201
    %p203 = pneg %p202
    // Predicated region
    $region9: #{cbam_forward.1} parent=5 // pred_check
      _
    $region10: #{cbam_forward.1} parent=5 // pred_check_branch
      %205 = sbr.rel (%p202) target = $region12
    $region11: #{cbam_forward.1} parent=5 // pred_region
      %s206 = ssub.s32 %s14, 1
      // Predicated region
      $region13: #{cbam_forward.1} parent=11 // pred_check
        %p207 = pneg %p61
      $region14: #{cbam_forward.1} parent=11 // pred_check_branch
        %209 = sbr.rel (%p207) target = $region16
      $region15: #{cbam_forward.1} parent=11 // pred_region
        _
      $region16: #{cbam_forward.1} parent=11 // pred_fallthru
        _
      // Predicated region
      $region17: #{cbam_forward.1} parent=11 // pred_check
        %p210 = pneg %p82
      $region18: #{cbam_forward.1} parent=11 // pred_check_branch
        %212 = sbr.rel (%p210) target = $region20
      $region19: #{cbam_forward.1} parent=11 // pred_region
        _
      $region20: #{cbam_forward.1} parent=11 // pred_fallthru
        _
      // Predicated region
      $region21: #{cbam_forward.1} parent=11 // pred_check
        %p213 = pneg %p103
      $region22: #{cbam_forward.1} parent=11 // pred_check_branch
        %215 = sbr.rel (%p213) target = $region24
      $region23: #{cbam_forward.1} parent=11 // pred_region
        _
      $region24: #{cbam_forward.1} parent=11 // pred_fallthru
        _
      // Predicated region
      $region25: #{cbam_forward.1} parent=11 // pred_check
        %p216 = pneg %p124
      $region26: #{cbam_forward.1} parent=11 // pred_check_branch
        %218 = sbr.rel (%p216) target = $region28
      $region27: #{cbam_forward.1} parent=11 // pred_region
        _
      $region28: #{cbam_forward.1} parent=11 // pred_fallthru
        _
      // Predicated region
      $region29: #{cbam_forward.1} parent=11 // pred_check
        %p219 = pneg %p145
      $region30: #{cbam_forward.1} parent=11 // pred_check_branch
        %221 = sbr.rel (%p219) target = $region32
      $region31: #{cbam_forward.1} parent=11 // pred_region
        _
      $region32: #{cbam_forward.1} parent=11 // pred_fallthru
        _
      // Predicated region
      $region33: #{cbam_forward.1} parent=11 // pred_check
        %p222 = pneg %p166
      $region34: #{cbam_forward.1} parent=11 // pred_check_branch
        %224 = sbr.rel (%p222) target = $region36
      $region35: #{cbam_forward.1} parent=11 // pred_region
        _
      $region36: #{cbam_forward.1} parent=11 // pred_fallthru
        _
    $region12: #{cbam_forward.1} parent=5 // pred_fallthru
      _
    %p225 = scmp.lt.s32.totalorder %s14, 2
    // Predicated region
    $region37: #{cbam_forward.1} parent=5 // pred_check
      %p226 = pneg %p225
    $region38: #{cbam_forward.1} parent=5 // pred_check_branch
      %228 = sbr.rel (%p226) target = $region40
    $region39: #{cbam_forward.1} parent=5 // pred_region
      // Predicated region
      $region41: #{cbam_forward.1} parent=39 // pred_check
        %p229 = pneg %p34
      $region42: #{cbam_forward.1} parent=39 // pred_check_branch
        %231 = sbr.rel (%p229) target = $region44
      $region43: #{cbam_forward.1} parent=39 // pred_region
        %p232 = scmp.lt.s32.totalorder %s14, 1
        %s233 = scalar_select %p232, %s14, 1
        %s234 = smul.addr %s233, 16
        %s235 = smul.addr %s234, 8
        %s236 = scalar_lea.vmem %s0, %s235
      $region44: #{cbam_forward.1} parent=39 // pred_fallthru
        _
    $region40: #{cbam_forward.1} parent=5 // pred_fallthru
      _
    %p237 = scmp.le.s32.totalorder 1, %s14
    %p238 = scmp.lt.s32.totalorder %s14, 3
    %p239 = pnand %p237, %p238
    %p240 = pneg %p239
    // Predicated region
    $region45: #{cbam_forward.1} parent=5 // pred_check
      _
    $region46: #{cbam_forward.1} parent=5 // pred_check_branch
      %242 = sbr.rel (%p239) target = $region48
    $region47: #{cbam_forward.1} parent=5 // pred_region
      %s243 = ssub.s32 %s14, 1
      %p244 = scmp.lt.s32.totalorder %s19, 1
      %s245 = scalar_select %p244, %s19, 1
      %s246 = smul.addr %s245, 16
      %s247 = smul.addr %s246, 8
      %s248 = scalar_lea.vmem %s0, %s247
      %p249 = pneg %p40
      %p250 = pneg %p37
      %p251 = pneg %p61
      %p252 = pneg %p58
      %p253 = pneg %p82
      %p254 = pneg %p79
      %p255 = pneg %p103
      %p256 = pneg %p100
      %p257 = pneg %p124
      %p258 = pneg %p121
      %p259 = pneg %p145
      %p260 = pneg %p142
      %p261 = pneg %p166
      %p262 = pneg %p163
      %p263 = pneg %p192
      %p264 = pneg %p189
      %p265 = scmp.lt.s32.totalorder %s19, 1
      %s266 = scalar_select %p265, %s19, 1
      %s267 = smul.addr %s266, 16
      %s268 = smul.addr %s267, 8
      %s269 = scalar_lea.vmem %s7, %s268
      %p270 = scmp.lt.s32.totalorder %s19, 1
      %s271 = scalar_select %p270, %s19, 1
      %s272 = smul.addr %s271, 16
      %s273 = smul.addr %s272, 8
      %s274 = scalar_lea.vmem %s0, %s273
      %p275 = scmp.lt.s32.totalorder %s19, 1
      %s276 = scalar_select %p275, %s19, 1
      %s277 = smul.addr %s276, 16
      %s278 = smul.addr %s277, 8
      %s279 = scalar_lea.vmem %s7, %s278
      %v280 = vld [vmem:[%s274] sm:$0xff]
      %v281 = vld [vmem:[%s274 + $0x8] sm:$0xff]
      %v282 = vld [vmem:[%s274 + $0x10] sm:$0xff]
      %v283 = vld [vmem:[%s274 + $0x18] sm:$0xff]
      %v284 = vld [vmem:[%s274 + $0x20] sm:$0xff]
      %v285 = vld [vmem:[%s274 + $0x28] sm:$0xff]
      %v286 = vld [vmem:[%s274 + $0x30] sm:$0xff]
      %v287 = vld [vmem:[%s274 + $0x38] sm:$0xff]
      %v288 = vld [vmem:[%s274 + $0x40] sm:$0xff]
      %v289 = vld [vmem:[%s274 + $0x48] sm:$0xff]
      %v290 = vld [vmem:[%s274 + $0x50] sm:$0xff]
      %v291 = vld [vmem:[%s274 + $0x58] sm:$0xff]
      %v292 = vld [vmem:[%s274 + $0x60] sm:$0xff]
      %v293 = vld [vmem:[%s274 + $0x68] sm:$0xff]
      %v294 = vld [vmem:[%s274 + $0x70] sm:$0xff]
      %v295 = vld [vmem:[%s274 + $0x78] sm:$0xff]
      %v296 = vadd.f32 %v280, %v281
      %297 = vadd.xlane.f32.xlu0 %v296
      %v298 = vpop.xlane.xlu0 %297
      %v299 = vadd.f32 %v282, %v283
      %300 = vadd.xlane.f32.xlu0 %v299
      %v301 = vpop.xlane.xlu0 %300
      %v302 = vadd.f32 %v284, %v285
      %303 = vadd.xlane.f32.xlu0 %v302
      %v304 = vpop.xlane.xlu0 %303
      %v305 = vadd.f32 %v286, %v287
      %306 = vadd.xlane.f32.xlu0 %v305
      %v307 = vpop.xlane.xlu0 %306
      %v308 = vadd.f32 %v288, %v289
      %309 = vadd.xlane.f32.xlu0 %v308
      %v310 = vpop.xlane.xlu0 %309
      %v311 = vadd.f32 %v290, %v291
      %312 = vadd.xlane.f32.xlu0 %v311
      %v313 = vpop.xlane.xlu0 %312
      %v314 = vadd.f32 %v292, %v293
      %315 = vadd.xlane.f32.xlu0 %v314
      %v316 = vpop.xlane.xlu0 %315
      %v317 = vadd.f32 %v294, %v295
      %318 = vadd.xlane.f32.xlu0 %v317
      %v319 = vpop.xlane.xlu0 %318
      %v320 = vmul.f32 %v298, 0.00390625
      %v321 = vmul.f32 %v301, 0.00390625
      %v322 = vmul.f32 %v304, 0.00390625
      %v323 = vmul.f32 %v307, 0.00390625
      %v324 = vmul.f32 %v310, 0.00390625
      %v325 = vmul.f32 %v313, 0.00390625
      %v326 = vmul.f32 %v316, 0.00390625
      %v327 = vmul.f32 %v319, 0.00390625
      %v328 = vld [vmem:[%s1] sm:$0xff]
      %v329 = vld [vmem:[%s1 + $0x8] sm:$0xff]
      %v330 = vld [vmem:[%s1 + $0x10] sm:$0xff]
      %v331 = vld [vmem:[%s1 + $0x18] sm:$0xff]
      %v332 = vld [vmem:[%s1 + $0x20] sm:$0xff]
      %v333 = vld [vmem:[%s1 + $0x28] sm:$0xff]
      %v334 = vld [vmem:[%s1 + $0x30] sm:$0xff]
      %v335 = vld [vmem:[%s1 + $0x38] sm:$0xff]
      %v336 = vld [vmem:[%s2] sm:$0x1]
      %v345 = vlaneseq
      %v346 = vand.u32 %v345, 127
      %v347 = vlaneseq
      %v348 = vshrl.u32 %v347, 7
      %v349 = vsub.s32 %v346, %v348
      %v350 = vrot.slane %v320, %v349
      %v351 = vadd.s32 %v346, 4294967288
      %v352 = vlaneseq
      %v353 = vshrl.u32 %v352, 7
      %v354 = vsub.s32 %v351, %v353
      %v355 = vrot.slane %v321, %v354
      %vm356 = vcmask 130112
      %v357 = vsel %vm356, %v355, %v350
      %v358 = vadd.s32 %v346, 4294967280
      %v359 = vlaneseq
      %v360 = vshrl.u32 %v359, 7
      %v361 = vsub.s32 %v358, %v360
      %v362 = vrot.slane %v322, %v361
      %vm363 = vcmask 195712
      %v364 = vsel %vm363, %v362, %v357
      %v365 = vadd.s32 %v346, 4294967272
      %v366 = vlaneseq
      %v367 = vshrl.u32 %v366, 7
      %v368 = vsub.s32 %v365, %v367
      %v369 = vrot.slane %v323, %v368
      %vm370 = vcmask 261312
      %v371 = vsel %vm370, %v369, %v364
      %v372 = vadd.s32 %v346, 4294967264
      %v373 = vlaneseq
      %v374 = vshrl.u32 %v373, 7
      %v375 = vsub.s32 %v372, %v374
      %v376 = vrot.slane %v324, %v375
      %vm377 = vcmask 326912
      %v378 = vsel %vm377, %v376, %v371
      %v379 = vadd.s32 %v346, 4294967256
      %v380 = vlaneseq
      %v381 = vshrl.u32 %v380, 7
      %v382 = vsub.s32 %v379, %v381
      %v383 = vrot.slane %v325, %v382
      %vm384 = vcmask 392512
      %v385 = vsel %vm384, %v383, %v378
      %v386 = vadd.s32 %v346, 4294967248
      %v387 = vlaneseq
      %v388 = vshrl.u32 %v387, 7
      %v389 = vsub.s32 %v386, %v388
      %v390 = vrot.slane %v326, %v389
      %vm391 = vcmask 458112
      %v392 = vsel %vm391, %v390, %v385
      %v393 = vadd.s32 %v346, 4294967240
      %v394 = vlaneseq
      %v395 = vshrl.u32 %v394, 7
      %v396 = vsub.s32 %v393, %v395
      %v397 = vrot.slane %v327, %v396
      %vm398 = vcmask 523712
      %v399 = vsel %vm398, %v397, %v392
      %vm400 = vcmask 523264
      %v401 = vsel %vm400, %v399, 0
      %403 = vmatprep.subr.mxu0 0.0
      %404 = vmatpush1.msra.mxu0 0.0
      %405 = vmatprep.subr.mxu0 0.0
      %406 = vmatpush1.msra.mxu0 0.0
      %407 = vmatprep.subr.mxu0 0.0
      %408 = vmatpush1.msra.mxu0 0.0
      %409 = vmatprep.subr.mxu0 0.0
      %410 = vmatpush1.msra.mxu0 0.0
      %411 = vmatprep.subr.mxu0 0.0
      %412 = vmatpush1.msra.mxu0 0.0
      %413 = vmatprep.subr.mxu0 0.0
      %414 = vmatpush1.msra.mxu0 0.0
      %415 = vmatprep.subr.mxu0 0.0
      %416 = vmatpush1.msra.mxu0 0.0
      %417 = vmatprep.subr.mxu0 0.0
      %418 = vmatpush1.msra.mxu0 0.0
      %419 = vmatprep.subr.mxu0 0.0
      %420 = vmatpush1.msra.mxu0 %v335
      %421 = vmatprep.subr.mxu0 0.0
      %422 = vmatpush1.msra.mxu0 %v334
      %423 = vmatprep.subr.mxu0 0.0
      %424 = vmatpush1.msra.mxu0 %v333
      %425 = vmatprep.subr.mxu0 0.0
      %426 = vmatpush1.msra.mxu0 %v332
      %427 = vmatprep.subr.mxu0 0.0
      %428 = vmatpush1.msra.mxu0 %v331
      %429 = vmatprep.subr.mxu0 0.0
      %430 = vmatpush1.msra.mxu0 %v330
      %431 = vmatprep.subr.mxu0 0.0
      %432 = vmatpush1.msra.mxu0 %v329
      %433 = vmatprep.subr.mxu0 0.0
      %434 = vmatpush1.msra.mxu0 %v328
      %435 = vmatprep.subr.mxu0 0.0
      %436 = vmatpush2.msra.mxu0 0.0
      %437 = vmatprep.subr.mxu0 0.0
      %438 = vmatpush2.msra.mxu0 0.0
      %439 = vmatprep.subr.mxu0 0.0
      %440 = vmatpush2.msra.mxu0 0.0
      %441 = vmatprep.subr.mxu0 0.0
      %442 = vmatpush2.msra.mxu0 0.0
      %443 = vmatprep.subr.mxu0 0.0
      %444 = vmatpush2.msra.mxu0 0.0
      %445 = vmatprep.subr.mxu0 0.0
      %446 = vmatpush2.msra.mxu0 0.0
      %447 = vmatprep.subr.mxu0 0.0
      %448 = vmatpush2.msra.mxu0 0.0
      %449 = vmatprep.subr.mxu0 0.0
      %450 = vmatpush2.msra.mxu0 0.0
      %451 = vmatprep.subr.mxu0 0.0
      %452 = vmatpush2.msra.mxu0 0.0
      %453 = vmatprep.subr.mxu0 0.0
      %454 = vmatpush2.msra.mxu0 0.0
      %455 = vmatprep.subr.mxu0 0.0
      %456 = vmatpush2.msra.mxu0 0.0
      %457 = vmatprep.subr.mxu0 0.0
      %458 = vmatpush2.msra.mxu0 0.0
      %459 = vmatprep.subr.mxu0 0.0
      %460 = vmatpush2.msra.mxu0 0.0
      %461 = vmatprep.subr.mxu0 0.0
      %462 = vmatpush2.msra.mxu0 0.0
      %463 = vmatprep.subr.mxu0 0.0
      %464 = vmatpush2.msra.mxu0 0.0
      %465 = vmatprep.subr.mxu0 0.0
      %466 = vmatpush2.msra.mxu0 0.0
      %467 = vmatprep.mubr.f32.mxu0 0.0
      %468 = vmatmul.mubr.f32.gmra.mxu0 %v401
      %v469 = vpop.f32.mrf.mxu0
      %v470 = vadd.f32 %v336, %v469
      %v471 = vpop.f32.mrf.mxu0
      %472 = vdwg.mxu0
      %v473 = vmax.f32 %v470, 0.0
      %v474 = vld [vmem:[%s3] sm:$0xf]
      %v475 = vld [vmem:[%s4] sm:$0x1]
      %vm476 = vcmask 31744
      %v478 = vsel %vm476, %v473, 0
      %vm480 = vcmask 1043456
      %v482 = vsel %vm480, %v474, 0
      %484 = vmatprep.subr.mxu0 0.0
      %485 = vmatpush1.msra.mxu0 0.0
      %486 = vmatprep.subr.mxu0 0.0
      %487 = vmatpush1.msra.mxu0 0.0
      %488 = vmatprep.subr.mxu0 0.0
      %489 = vmatpush1.msra.mxu0 0.0
      %490 = vmatprep.subr.mxu0 0.0
      %491 = vmatpush1.msra.mxu0 0.0
      %492 = vmatprep.subr.mxu0 0.0
      %493 = vmatpush1.msra.mxu0 0.0
      %494 = vmatprep.subr.mxu0 0.0
      %495 = vmatpush1.msra.mxu0 0.0
      %496 = vmatprep.subr.mxu0 0.0
      %497 = vmatpush1.msra.mxu0 0.0
      %498 = vmatprep.subr.mxu0 0.0
      %499 = vmatpush1.msra.mxu0 0.0
      %500 = vmatprep.subr.mxu0 0.0
      %501 = vmatpush1.msra.mxu0 0.0
      %502 = vmatprep.subr.mxu0 0.0
      %503 = vmatpush1.msra.mxu0 0.0
      %504 = vmatprep.subr.mxu0 0.0
      %505 = vmatpush1.msra.mxu0 0.0
      %506 = vmatprep.subr.mxu0 0.0
      %507 = vmatpush1.msra.mxu0 0.0
      %508 = vmatprep.subr.mxu0 0.0
      %509 = vmatpush1.msra.mxu0 0.0
      %510 = vmatprep.subr.mxu0 0.0
      %511 = vmatpush1.msra.mxu0 0.0
      %512 = vmatprep.subr.mxu0 0.0
      %513 = vmatpush1.msra.mxu0 0.0
      %514 = vmatprep.subr.mxu0 0.0
      %515 = vmatpush1.msra.mxu0 %v482
      %516 = vmatprep.subr.mxu0 0.0
      %517 = vmatpush2.msra.mxu0 0.0
      %518 = vmatprep.subr.mxu0 0.0
      %519 = vmatpush2.msra.mxu0 0.0
      %520 = vmatprep.subr.mxu0 0.0
      %521 = vmatpush2.msra.mxu0 0.0
      %522 = vmatprep.subr.mxu0 0.0
      %523 = vmatpush2.msra.mxu0 0.0
      %524 = vmatprep.subr.mxu0 0.0
      %525 = vmatpush2.msra.mxu0 0.0
      %526 = vmatprep.subr.mxu0 0.0
      %527 = vmatpush2.msra.mxu0 0.0
      %528 = vmatprep.subr.mxu0 0.0
      %529 = vmatpush2.msra.mxu0 0.0
      %530 = vmatprep.subr.mxu0 0.0
      %531 = vmatpush2.msra.mxu0 0.0
      %532 = vmatprep.subr.mxu0 0.0
      %533 = vmatpush2.msra.mxu0 0.0
      %534 = vmatprep.subr.mxu0 0.0
      %535 = vmatpush2.msra.mxu0 0.0
      %536 = vmatprep.subr.mxu0 0.0
      %537 = vmatpush2.msra.mxu0 0.0
      %538 = vmatprep.subr.mxu0 0.0
      %539 = vmatpush2.msra.mxu0 0.0
      %540 = vmatprep.subr.mxu0 0.0
      %541 = vmatpush2.msra.mxu0 0.0
      %542 = vmatprep.subr.mxu0 0.0
      %543 = vmatpush2.msra.mxu0 0.0
      %544 = vmatprep.subr.mxu0 0.0
      %545 = vmatpush2.msra.mxu0 0.0
      %546 = vmatprep.subr.mxu0 0.0
      %547 = vmatpush2.msra.mxu0 0.0
      %548 = vmatprep.mubr.f32.mxu0 0.0
      %549 = vmatmul.mubr.f32.gmra.mxu0 %v478
      %v550 = vpop.f32.mrf.mxu0
      %v551 = vadd.f32 %v475, %v550
      %v552 = vpop.f32.mrf.mxu0
      %553 = vdwg.mxu0
      %v554 = vxor.u32 %v551, 2147483648
      %v555 = vmul.f32 %v554, 1.442695
      %v556 = vpow.pop %v555
      %v557 = vadd.f32 %v556, 1.0
      %v558 = vrcp.pop %v557
      %v559 = vmul.f32 1.0, %v558
      %v560 = vlaneseq
      %v561 = vshrl.u32 %v560, 7
      %v562 = vsub.s32 0, %v561
      %v563 = vrot.slane %v559, %v562
      %565 = vbcast.lane.b32.xlu0 %v563, 256
      %v566 = vpop.permute.xlu0 %565
      %s568 = sor.u32 256, 8
      %569 = vbcast.lane.b32.xlu0 %v563, %s568
      %v570 = vpop.permute.xlu0 %569
      %s572 = sor.u32 256, 16
      %573 = vbcast.lane.b32.xlu0 %v563, %s572
      %v574 = vpop.permute.xlu0 %573
      %s576 = sor.u32 256, 24
      %577 = vbcast.lane.b32.xlu0 %v563, %s576
      %v578 = vpop.permute.xlu0 %577
      %s580 = sor.u32 256, 32
      %581 = vbcast.lane.b32.xlu0 %v563, %s580
      %v582 = vpop.permute.xlu0 %581
      %s584 = sor.u32 256, 40
      %585 = vbcast.lane.b32.xlu0 %v563, %s584
      %v586 = vpop.permute.xlu0 %585
      %s588 = sor.u32 256, 48
      %589 = vbcast.lane.b32.xlu0 %v563, %s588
      %v590 = vpop.permute.xlu0 %589
      %s592 = sor.u32 256, 56
      %593 = vbcast.lane.b32.xlu0 %v563, %s592
      %v594 = vpop.permute.xlu0 %593
      %v595 = vmul.f32 %v280, %v566
      %v596 = vmul.f32 %v281, %v566
      %v597 = vmul.f32 %v282, %v570
      %v598 = vmul.f32 %v283, %v570
      %v599 = vmul.f32 %v284, %v574
      %v600 = vmul.f32 %v285, %v574
      %v601 = vmul.f32 %v286, %v578
      %v602 = vmul.f32 %v287, %v578
      %v603 = vmul.f32 %v288, %v582
      %v604 = vmul.f32 %v289, %v582
      %v605 = vmul.f32 %v290, %v586
      %v606 = vmul.f32 %v291, %v586
      %v607 = vmul.f32 %v292, %v590
      %v608 = vmul.f32 %v293, %v590
      %v609 = vmul.f32 %v294, %v594
      %v610 = vmul.f32 %v295, %v594
      %v611 = vadd.f32 %v595, %v597
      %v612 = vadd.f32 %v611, %v599
      %v613 = vadd.f32 %v612, %v601
      %v614 = vadd.f32 %v613, %v603
      %v615 = vadd.f32 %v614, %v605
      %v616 = vadd.f32 %v615, %v607
      %v617 = vadd.f32 %v616, %v609
      %v618 = vrot.slane %v617, 4
      %v619 = vadd.f32 %v617, %v618
      %v620 = vrot.slane %v619, 2
      %v621 = vadd.f32 %v619, %v620
      %v622 = vrot.slane %v621, 1
      %v623 = vadd.f32 %v621, %v622
      %v624 = vadd.f32 %v596, %v598
      %v625 = vadd.f32 %v624, %v600
      %v626 = vadd.f32 %v625, %v602
      %v627 = vadd.f32 %v626, %v604
      %v628 = vadd.f32 %v627, %v606
      %v629 = vadd.f32 %v628, %v608
      %v630 = vadd.f32 %v629, %v610
      %v631 = vrot.slane %v630, 4
      %v632 = vadd.f32 %v630, %v631
      %v633 = vrot.slane %v632, 2
      %v634 = vadd.f32 %v632, %v633
      %v635 = vrot.slane %v634, 1
      %v636 = vadd.f32 %v634, %v635
      %v637 = vrcp.pop 64.0
      %v638 = vmul.f32 %v623, %v637
      %v639 = vmul.f32 %v636, %v637
      %v640 = vld [vmem:[%s5] sm:$0xff]
      %v641 = vld [vmem:[%s5 + $0x8] sm:$0xff]
      %v642 = vld [vmem:[%s5 + $0x10] sm:$0xff]
      %v643 = vld [vmem:[%s5 + $0x18] sm:$0xff]
      %v644 = vld [vmem:[%s5 + $0x20] sm:$0xff]
      %v645 = vld [vmem:[%s5 + $0x28] sm:$0xff]
      %v646 = vld [vmem:[%s5 + $0x30] sm:$0xff]
      %v647 = vld [vmem:[%s5 + $0x38] sm:$0xff]
      %v648 = vld [vmem:[%s5 + $0x40] sm:$0xff]
      %v649 = vld [vmem:[%s5 + $0x48] sm:$0xff]
      %v650 = vld [vmem:[%s5 + $0x50] sm:$0xff]
      %v651 = vld [vmem:[%s5 + $0x58] sm:$0xff]
      %v652 = vld [vmem:[%s5 + $0x60] sm:$0xff]
      %v653 = vld [vmem:[%s5 + $0x68] sm:$0xff]
      %v654 = vld [vmem:[%s5 + $0x70] sm:$0xff]
      %v655 = vld [vmem:[%s5 + $0x78] sm:$0xff]
      %v656 = vld [vmem:[%s5 + $0x80] sm:$0xff]
      %v657 = vld [vmem:[%s5 + $0x88] sm:$0xff]
      %v658 = vld [vmem:[%s5 + $0x90] sm:$0xff]
      %v659 = vld [vmem:[%s5 + $0x98] sm:$0xff]
      %v660 = vld [vmem:[%s5 + $0xa0] sm:$0xff]
      %v661 = vld [vmem:[%s5 + $0xa8] sm:$0xff]
      %v662 = vld [vmem:[%s5 + $0xb0] sm:$0xff]
      %v663 = vld [vmem:[%s5 + $0xb8] sm:$0xff]
      %v664 = vld [vmem:[%s5 + $0xc0] sm:$0xff]
      %v665 = vld [vmem:[%s5 + $0xc8] sm:$0xff]
      %v666 = vld [vmem:[%s5 + $0xd0] sm:$0xff]
      %v667 = vld [vmem:[%s5 + $0xd8] sm:$0xff]
      %v668 = vld [vmem:[%s5 + $0xe0] sm:$0xff]
      %v669 = vld [vmem:[%s5 + $0xe8] sm:$0xff]
      %v670 = vld [vmem:[%s5 + $0xf0] sm:$0xff]
      %v671 = vld [vmem:[%s5 + $0xf8] sm:$0xff]
      %v672 = vld [vmem:[%s5 + $0x100] sm:$0xff]
      %v673 = vld [vmem:[%s5 + $0x108] sm:$0xff]
      %v674 = vld [vmem:[%s5 + $0x110] sm:$0xff]
      %v675 = vld [vmem:[%s5 + $0x118] sm:$0xff]
      %v676 = vld [vmem:[%s5 + $0x120] sm:$0xff]
      %v677 = vld [vmem:[%s5 + $0x128] sm:$0xff]
      %v678 = vld [vmem:[%s5 + $0x130] sm:$0xff]
      %v679 = vld [vmem:[%s5 + $0x138] sm:$0xff]
      %v680 = vld [vmem:[%s5 + $0x140] sm:$0xff]
      %v681 = vld [vmem:[%s5 + $0x148] sm:$0xff]
      %v682 = vld [vmem:[%s5 + $0x150] sm:$0xff]
      %v683 = vld [vmem:[%s5 + $0x158] sm:$0xff]
      %v684 = vld [vmem:[%s5 + $0x160] sm:$0xff]
      %v685 = vld [vmem:[%s5 + $0x168] sm:$0xff]
      %v686 = vld [vmem:[%s5 + $0x170] sm:$0xff]
      %v687 = vld [vmem:[%s5 + $0x178] sm:$0xff]
      %v688 = vld [vmem:[%s5 + $0x180] sm:$0xff]
      %v689 = vld [vmem:[%s5 + $0x188] sm:$0xff]
      %v690 = vld [vmem:[%s5 + $0x190] sm:$0xff]
      %v691 = vld [vmem:[%s5 + $0x198] sm:$0xff]
      %v692 = vld [vmem:[%s5 + $0x1a0] sm:$0xff]
      %v693 = vld [vmem:[%s5 + $0x1a8] sm:$0xff]
      %v694 = vld [vmem:[%s5 + $0x1b0] sm:$0xff]
      %v695 = vld [vmem:[%s5 + $0x1b8] sm:$0xff]
      %v696 = vld [vmem:[%s5 + $0x1c0] sm:$0xff]
      %v697 = vld [vmem:[%s5 + $0x1c8] sm:$0xff]
      %v698 = vld [vmem:[%s5 + $0x1d0] sm:$0xff]
      %v699 = vld [vmem:[%s5 + $0x1d8] sm:$0xff]
      %v700 = vld [vmem:[%s5 + $0x1e0] sm:$0xff]
      %v701 = vld [vmem:[%s5 + $0x1e8] sm:$0xff]
      %v702 = vld [vmem:[%s5 + $0x1f0] sm:$0xff]
      %v703 = vld [vmem:[%s5 + $0x1f8] sm:$0xff]
      %s704 = sld [smem:[#allocation2]]
      %v705 = vstv %s704
      %706 = vmatprep.subr.mxu0 %v671
      %707 = vmatpush1.msra.mxu0 %v670
      %708 = vmatprep.subr.mxu0 %v669
      %709 = vmatpush1.msra.mxu0 %v668
      %710 = vmatprep.subr.mxu0 %v667
      %711 = vmatpush1.msra.mxu0 %v666
      %712 = vmatprep.subr.mxu0 %v665
      %713 = vmatpush1.msra.mxu0 %v664
      %714 = vmatprep.subr.mxu0 %v663
      %715 = vmatpush1.msra.mxu0 %v662
      %716 = vmatprep.subr.mxu0 %v661
      %717 = vmatpush1.msra.mxu0 %v660
      %718 = vmatprep.subr.mxu0 %v659
      %719 = vmatpush1.msra.mxu0 %v658
      %720 = vmatprep.subr.mxu0 %v657
      %721 = vmatpush1.msra.mxu0 %v656
      %722 = vmatprep.subr.mxu0 %v655
      %723 = vmatpush1.msra.mxu0 %v654
      %724 = vmatprep.subr.mxu0 %v653
      %725 = vmatpush1.msra.mxu0 %v652
      %726 = vmatprep.subr.mxu0 %v651
      %727 = vmatpush1.msra.mxu0 %v650
      %728 = vmatprep.subr.mxu0 %v649
      %729 = vmatpush1.msra.mxu0 %v648
      %730 = vmatprep.subr.mxu0 %v647
      %731 = vmatpush1.msra.mxu0 %v646
      %732 = vmatprep.subr.mxu0 %v645
      %733 = vmatpush1.msra.mxu0 %v644
      %734 = vmatprep.subr.mxu0 %v643
      %735 = vmatpush1.msra.mxu0 %v642
      %736 = vmatprep.subr.mxu0 %v641
      %737 = vmatpush1.msra.mxu0 %v640
      %738 = vmatprep.subr.mxu0 %v703
      %739 = vmatpush2.msra.mxu0 %v702
      %740 = vmatprep.subr.mxu0 %v701
      %741 = vmatpush2.msra.mxu0 %v700
      %742 = vmatprep.subr.mxu0 %v699
      %743 = vmatpush2.msra.mxu0 %v698
      %744 = vmatprep.subr.mxu0 %v697
      %745 = vmatpush2.msra.mxu0 %v696
      %746 = vmatprep.subr.mxu0 %v695
      %747 = vmatpush2.msra.mxu0 %v694
      %748 = vmatprep.subr.mxu0 %v693
      %749 = vmatpush2.msra.mxu0 %v692
      %750 = vmatprep.subr.mxu0 %v691
      %751 = vmatpush2.msra.mxu0 %v690
      %752 = vmatprep.subr.mxu0 %v689
      %753 = vmatpush2.msra.mxu0 %v688
      %754 = vmatprep.subr.mxu0 %v687
      %755 = vmatpush2.msra.mxu0 %v686
      %756 = vmatprep.subr.mxu0 %v685
      %757 = vmatpush2.msra.mxu0 %v684
      %758 = vmatprep.subr.mxu0 %v683
      %759 = vmatpush2.msra.mxu0 %v682
      %760 = vmatprep.subr.mxu0 %v681
      %761 = vmatpush2.msra.mxu0 %v680
      %762 = vmatprep.subr.mxu0 %v679
      %763 = vmatpush2.msra.mxu0 %v678
      %764 = vmatprep.subr.mxu0 %v677
      %765 = vmatpush2.msra.mxu0 %v676
      %766 = vmatprep.subr.mxu0 %v675
      %767 = vmatpush2.msra.mxu0 %v674
      %768 = vmatprep.subr.mxu0 %v673
      %769 = vmatpush2.msra.mxu0 %v672
      %770 = vmatprep.mubr.f32.mxu0 %v639
      %771 = vmatmul.mubr.f32.gmra.mxu0 %v638
      %v772 = vpop.f32.mrf.mxu0
      %v773 = vadd.f32 %v705, %v772
      %v774 = vpop.f32.mrf.mxu0
      %v775 = vadd.f32 %v705, %v774
      %776 = vdwg.mxu0
      %v777 = vxor.u32 %v773, 2147483648
      %v778 = vxor.u32 %v775, 2147483648
      %v779 = vmul.f32 %v777, 1.442695
      %v780 = vpow.pop %v779
      %v781 = vmul.f32 %v778, 1.442695
      %v782 = vpow.pop %v781
      %v783 = vadd.f32 %v780, 1.0
      %v784 = vadd.f32 %v782, 1.0
      %v785 = vrcp.pop %v783
      %v786 = vmul.f32 1.0, %v785
      %v787 = vrcp.pop %v784
      %v788 = vmul.f32 1.0, %v787
      %v789 = vlaneseq
      %v790 = vshrl.u32 %v789, 7
      %v791 = vsub.s32 0, %v790
      %v792 = vrot.slane %v786, %v791
      %v793 = vlaneseq
      %v794 = vshrl.u32 %v793, 7
      %v795 = vsub.s32 0, %v794
      %v796 = vrot.slane %v788, %v795
      %v797 = vmul.f32 %v595, %v792
      %v798 = vmul.f32 %v596, %v796
      %v799 = vmul.f32 %v597, %v792
      %v800 = vmul.f32 %v598, %v796
      %v801 = vmul.f32 %v599, %v792
      %v802 = vmul.f32 %v600, %v796
      %v803 = vmul.f32 %v601, %v792
      %v804 = vmul.f32 %v602, %v796
      %v805 = vmul.f32 %v603, %v792
      %v806 = vmul.f32 %v604, %v796
      %v807 = vmul.f32 %v605, %v792
      %v808 = vmul.f32 %v606, %v796
      %v809 = vmul.f32 %v607, %v792
      %v810 = vmul.f32 %v608, %v796
      %v811 = vmul.f32 %v609, %v792
      %v812 = vmul.f32 %v610, %v796
      %813 = vst [vmem:[%s279] sm:$0xff] %v797
      %814 = vst [vmem:[%s279 + $0x8] sm:$0xff] %v798
      %815 = vst [vmem:[%s279 + $0x10] sm:$0xff] %v799
      %816 = vst [vmem:[%s279 + $0x18] sm:$0xff] %v800
      %817 = vst [vmem:[%s279 + $0x20] sm:$0xff] %v801
      %818 = vst [vmem:[%s279 + $0x28] sm:$0xff] %v802
      %819 = vst [vmem:[%s279 + $0x30] sm:$0xff] %v803
      %820 = vst [vmem:[%s279 + $0x38] sm:$0xff] %v804
      %821 = vst [vmem:[%s279 + $0x40] sm:$0xff] %v805
      %822 = vst [vmem:[%s279 + $0x48] sm:$0xff] %v806
      %823 = vst [vmem:[%s279 + $0x50] sm:$0xff] %v807
      %824 = vst [vmem:[%s279 + $0x58] sm:$0xff] %v808
      %825 = vst [vmem:[%s279 + $0x60] sm:$0xff] %v809
      %826 = vst [vmem:[%s279 + $0x68] sm:$0xff] %v810
      %827 = vst [vmem:[%s279 + $0x70] sm:$0xff] %v811
      %828 = vst [vmem:[%s279 + $0x78] sm:$0xff] %v812
      %p829 = scmp.lt.s32.totalorder %s19, 1
      %s830 = scalar_select %p829, %s19, 1
      %s831 = smul.addr %s830, 16
      %s832 = smul.addr %s831, 8
      %s833 = scalar_lea.vmem %s7, %s832
      // Predicated region
      $region49: #{cbam_forward.1} parent=47 // pred_check
        %p834 = pneg %p189
      $region50: #{cbam_forward.1} parent=47 // pred_check_branch
        %836 = sbr.rel (%p834) target = $region52
      $region51: #{cbam_forward.1} parent=47 // pred_region
        _
      $region52: #{cbam_forward.1} parent=47 // pred_fallthru
        _
    $region48: #{cbam_forward.1} parent=5 // pred_fallthru
      _
    %p837 = scmp.le.s32.totalorder 2, %s14
    // Predicated region
    $region53: #{cbam_forward.1} parent=5 // pred_check
      %p838 = pneg %p837
    $region54: #{cbam_forward.1} parent=5 // pred_check_branch
      %840 = sbr.rel (%p838) target = $region56
    $region55: #{cbam_forward.1} parent=5 // pred_region
      %s841 = ssub.s32 %s14, 2
      // Predicated region
      $region57: #{cbam_forward.1} parent=55 // pred_check
        %p842 = pneg %p195
      $region58: #{cbam_forward.1} parent=55 // pred_check_branch
        %844 = sbr.rel (%p842) target = $region60
      $region59: #{cbam_forward.1} parent=55 // pred_region
        %p845 = scmp.lt.s32.totalorder %s20, 1
        %s846 = scalar_select %p845, %s20, 1
        %s847 = smul.addr %s846, 16
        %s848 = smul.addr %s847, 8
        %s849 = scalar_lea.vmem %s7, %s848
      $region60: #{cbam_forward.1} parent=55 // pred_fallthru
        _
    $region56: #{cbam_forward.1} parent=5 // pred_fallthru
      _
  $region6: #{cbam_forward.1} parent=0 // loop_footer
    %s18 = sadd.s32 1, %s14
  $region7: #{cbam_forward.1} parent=0 // loop_footer_branch
    %13 = sbr.rel target = $region3
  $region8: #{cbam_forward.1} parent=0 // loop_exit
    _

</llo_original>
